<compile_context>
chip_gen: v5e
topology: v5e:2x2
jax: 0.10.0
libtpu: 0.0.40
codegen_flags: <defaults>
</compile_context>

<pallas_src>
import jax
import jax.numpy as jnp
from jax.experimental import pallas as pl


# ----------------------------------------------------------------------------
# Pallas kernel: entire batch in one invocation.
# ----------------------------------------------------------------------------
def _posterior_kernel(
    xs_ref,      # (B, S, E)  embedded src
    xt_ref,      # (B, T, E)  embedded trg
    w_big_ref,   # (4E, 2H)   block-diag [[w_src, 0], [0, w_trg]]
    b_big_ref,   # (1, 2H)    [S*b_src | T*b_trg]
    w_z_ref,     # (2H, L)
    b_z_ref,     # (1, L)
    w_head_ref,  # (L, 2L)    [w_mu | w_var]
    b_head_ref,  # (1, 2L)    [b_mu | b_var]
    out_ref,     # (B, 2L)    [mu | log_var]
):
    f32 = jnp.float32
    xs = xs_ref[...]   # (B, S, E)
    xt = xt_ref[...]   # (B, T, E)

    # Attention logits, computed once: s_ts[b, t, s] = <x_trg[b,t], x_src[b,s]>.
    s_ts = jnp.einsum("bte,bse->bts", xt, xs, preferred_element_type=f32)

    # attn_src = softmax over s (last axis). Only its column-sums are needed.
    m_s = jnp.max(s_ts, axis=2, keepdims=True)
    e_s = jnp.exp(s_ts - m_s)
    a_ts = e_s * pl.reciprocal(jnp.sum(e_s, axis=2, keepdims=True), approx=True)
    q = jnp.sum(a_ts, axis=1)                       # (B, S) = sum_t attn_src

    # attn_trg = softmax over t. Same logits, softmax along axis 1.
    m_t = jnp.max(s_ts, axis=1, keepdims=True)
    e_t = jnp.exp(s_ts - m_t)
    a_st = e_t * pl.reciprocal(jnp.sum(e_t, axis=1, keepdims=True), approx=True)
    r = jnp.sum(a_st, axis=2)                       # (B, T) = sum_s attn_trg

    # Sequence sums pushed through the attention matmuls (VPU/XLU only):
    cs_trg = jnp.sum(r[:, :, None] * xt, axis=1)    # (B, E) = sum_S c_trg
    cs_src = jnp.sum(q[:, :, None] * xs, axis=1)    # (B, E) = sum_T c_src
    xs_sum = jnp.sum(xs, axis=1)                    # (B, E)
    xt_sum = jnp.sum(xt, axis=1)                    # (B, E)

    # One (B, 4E) @ (4E, 2H) matmul against the block-diagonal weight slab
    # yields [v_src | v_trg] in a single MXU push.
    u = jnp.concatenate([cs_trg, xs_sum, cs_src, xt_sum], axis=-1)   # (B, 4E)
    v = jnp.tanh(jnp.dot(u, w_big_ref[...], preferred_element_type=f32)
                 + b_big_ref[...])                                   # (B, 2H)

    h_z = jnp.tanh(jnp.dot(v, w_z_ref[...], preferred_element_type=f32)
                   + b_z_ref[...])                                   # (B, L)

    # Fused mu/log_var head: one matmul, one lane-dense store.
    out_ref[...] = (jnp.dot(h_z, w_head_ref[...], preferred_element_type=f32)
                    + b_head_ref[...])                               # (B, 2L)


# ----------------------------------------------------------------------------
# Wrapper
# ----------------------------------------------------------------------------
@jax.jit
def attention_approximate_posterior(src, encoded_src, trg, encoded_trg, params):
    """Pallas implementation of AttentionApproximatePosterior.forward.

    src: (S, B) int32 token ids, trg: (T, B) int32 token ids.
    encoded_src / encoded_trg are unused (matches the PyTorch module).
    Returns (mu, log_var), each (B, L) float32.
    """
    del encoded_src, encoded_trg  # unused in the reference forward

    # Gather batch-major directly (indices transposed, not the float tensor).
    x_src = jnp.take(params["src_emb"], src.T, axis=0).astype(jnp.float32)  # (B,S,E)
    x_trg = jnp.take(params["trg_emb"], trg.T, axis=0).astype(jnp.float32)  # (B,T,E)

    B, S, E = x_src.shape
    T = x_trg.shape[1]
    H = params["b_src"].shape[-1]
    L = params["b"].shape[-1]

    # Block-diagonal slab so the src/trg concat-linears become one matmul.
    zeros = jnp.zeros((2 * E, H), jnp.float32)
    w_big = jnp.concatenate(
        [jnp.concatenate([params["w_src"], zeros], axis=1),    # rows 0:2E
         jnp.concatenate([zeros, params["w_trg"]], axis=1)],   # rows 2E:4E
        axis=0)                                                # (4E, 2H)
    b_big = jnp.concatenate(
        [jnp.float32(S) * params["b_src"],
         jnp.float32(T) * params["b_trg"]]).reshape(1, 2 * H)

    w_head = jnp.concatenate([params["w_mu"], params["w_var"]], axis=1)  # (L, 2L)
    b_head = jnp.concatenate([params["b_mu"], params["b_var"]]).reshape(1, 2 * L)

    # Whole problem fits in VMEM (a few hundred KiB); single invocation, no grid.
    # TODO(synk): for large B, block the batch axis with a grid (>=8 per step)
    # and mark it "parallel" so v7x's two TensorCores split it.
    out = pl.pallas_call(
        _posterior_kernel,
        out_shape=jax.ShapeDtypeStruct((B, 2 * L), jnp.float32),
    )(x_src, x_trg, w_big, b_big,
      params["w"], params["b"].reshape(1, L), w_head, b_head)

    return out[:, :L], out[:, L:]


# ----------------------------------------------------------------------------
# Pure-JAX reference (mirrors the PyTorch forward exactly).
# ----------------------------------------------------------------------------
def _reference(src, trg, p):
    x_src = jnp.take(p["src_emb"], src, axis=0).transpose(1, 0, 2)
    x_trg = jnp.take(p["trg_emb"], trg, axis=0).transpose(1, 0, 2)
    a_ts = jax.nn.softmax(jnp.einsum("bte,bse->bts", x_trg, x_src), axis=-1)
    c_src = jnp.einsum("bts,bse->bte", a_ts, x_src)
    a_st = jax.nn.softmax(jnp.einsum("bse,bte->bst", x_src, x_trg), axis=-1)
    c_trg = jnp.einsum("bst,bte->bse", a_st, x_trg)
    v_src = jnp.tanh(
        (jnp.concatenate([c_trg, x_src], -1) @ p["w_src"] + p["b_src"]).sum(1))
    v_trg = jnp.tanh(
        (jnp.concatenate([c_src, x_trg], -1) @ p["w_trg"] + p["b_trg"]).sum(1))
    h_z = jnp.tanh(jnp.concatenate([v_src, v_trg], -1) @ p["w"] + p["b"])
    mu = h_z @ p["w_mu"] + p["b_mu"]
    log_var = h_z @ p["w_var"] + p["b_var"]
    return mu, log_var


# ----------------------------------------------------------------------------
# Deterministic parameter init (shapes from the module __init__).
# Linear weights stored pre-transposed: (in_features, out_features).
# ----------------------------------------------------------------------------
def init_params(key, src_vocab, trg_vocab, embed, hidden, latent):
    ks = jax.random.split(key, 12)
    u = lambda k, shape, scale: jax.random.uniform(
        k, shape, jnp.float32, -scale, scale)
    return {
        "src_emb": u(ks[0], (src_vocab, embed), 1.0),
        "trg_emb": u(ks[1], (trg_vocab, embed), 1.0),
        "w_src": u(ks[2], (2 * embed, hidden), (2 * embed) ** -0.5),
        "b_src": u(ks[3], (hidden,), (2 * embed) ** -0.5),
        "w_trg": u(ks[4], (2 * embed, hidden), (2 * embed) ** -0.5),
        "b_trg": u(ks[5], (hidden,), (2 * embed) ** -0.5),
        "w": u(ks[6], (2 * hidden, latent), (2 * hidden) ** -0.5),
        "b": u(ks[7], (latent,), (2 * hidden) ** -0.5),
        "w_mu": u(ks[8], (latent, latent), latent ** -0.5),
        "b_mu": u(ks[9], (latent,), latent ** -0.5),
        "w_var": u(ks[10], (latent, latent), latent ** -0.5),
        "b_var": u(ks[11], (latent,), latent ** -0.5),
    }


if __name__ == "__main__":
    SRC_VOCAB, TRG_VOCAB = 50, 60
    EMBED, HIDDEN, LATENT = 32, 32, 16
    B, S, T = 2, 8, 8

    key = jax.random.PRNGKey(0)
    kp, ks, kt = jax.random.split(key, 3)
    params = init_params(kp, SRC_VOCAB, TRG_VOCAB, EMBED, HIDDEN, LATENT)

    # src / trg are (seq_len, batch) token ids (module does .transpose(0, 1)).
    src = jax.random.randint(ks, (S, B), 0, SRC_VOCAB, dtype=jnp.int32)
    trg = jax.random.randint(kt, (T, B), 0, TRG_VOCAB, dtype=jnp.int32)
    # encoded_src / encoded_trg are unused by the forward pass; pass dummies.
    encoded_src = jnp.zeros((S, B, HIDDEN), jnp.float32)
    encoded_trg = jnp.zeros((T, B, HIDDEN), jnp.float32)

    mu, log_var = attention_approximate_posterior(
        src, encoded_src, trg, encoded_trg, params)
    jax.block_until_ready((mu, log_var))

    mu_ref, lv_ref = _reference(src, trg, params)
    assert mu.shape == (B, LATENT) and log_var.shape == (B, LATENT)
    # approx reciprocal + sum-before-matmul reassociation -> allow 1e-3.
    assert jnp.allclose(mu, mu_ref, atol=1e-3, rtol=1e-3), "mu mismatch"
    assert jnp.allclose(log_var, lv_ref, atol=1e-3, rtol=1e-3), "log_var mismatch"

    print("KERNEL_OK")
</pallas_src>

<mosaic_0001>
module attributes {stable_mosaic.version = 11 : i64} {
  func.func @_posterior_kernel(%arg0: memref<2x8x32xf32, #tpu.memory_space<vmem>>, %arg1: memref<2x8x32xf32, #tpu.memory_space<vmem>>, %arg2: memref<128x64xf32, #tpu.memory_space<vmem>>, %arg3: memref<1x64xf32, #tpu.memory_space<vmem>>, %arg4: memref<64x16xf32, #tpu.memory_space<vmem>>, %arg5: memref<1x16xf32, #tpu.memory_space<vmem>>, %arg6: memref<16x32xf32, #tpu.memory_space<vmem>>, %arg7: memref<1x32xf32, #tpu.memory_space<vmem>>, %arg8: memref<2x32xf32, #tpu.memory_space<vmem>>) attributes {dimension_semantics = [], scalar_prefetch = 0 : i64, scratch_operands = 0 : i64, tpu.core_type = #tpu.core_type<tc>} {
    %c0 = arith.constant 0 : index
    %c0_0 = arith.constant 0 : index
    %c0_1 = arith.constant 0 : index
    %0 = vector.load %arg0[%c0, %c0_0, %c0_1] : memref<2x8x32xf32, #tpu.memory_space<vmem>>, vector<2x8x32xf32>
    %c0_2 = arith.constant 0 : index
    %c0_3 = arith.constant 0 : index
    %c0_4 = arith.constant 0 : index
    %1 = vector.load %arg1[%c0_2, %c0_3, %c0_4] : memref<2x8x32xf32, #tpu.memory_space<vmem>>, vector<2x8x32xf32>
    "tpu.trace_start"() <{level = 10 : i32, message = "bte,bse->bts"}> : () -> ()
    %cst = arith.constant dense<0.000000e+00> : vector<2x8x8xf32>
    %2 = tpu.matmul %1, %0, %cst {dimension_numbers = #tpu.dot_dimension_numbers<[2], [2], [1], [1], [0, 0, 0, 1, 1, 1], [0], [0]>} : vector<2x8x32xf32>, vector<2x8x32xf32>, vector<2x8x8xf32> -> vector<2x8x8xf32>
    "tpu.trace_stop"() : () -> ()
    %cst_5 = arith.constant dense<0xFF800000> : vector<2x8xf32>
    %3 = vector.multi_reduction <maximumf>, %2, %cst_5 [2] : vector<2x8x8xf32> to vector<2x8xf32>
    %4 = vector.shape_cast %3 : vector<2x8xf32> to vector<2x8x1xf32>
    %5 = vector.broadcast %4 : vector<2x8x1xf32> to vector<2x8x8xf32>
    %6 = arith.subf %2, %5 : vector<2x8x8xf32>
    %7 = math.exp %6 : vector<2x8x8xf32>
    %cst_6 = arith.constant dense<0.000000e+00> : vector<2x8xf32>
    %8 = vector.multi_reduction <add>, %7, %cst_6 [2] : vector<2x8x8xf32> to vector<2x8xf32>
    %9 = vector.shape_cast %8 : vector<2x8xf32> to vector<2x8x1xf32>
    %10 = tpu.reciprocal %9 {approx = true} : vector<2x8x1xf32> -> vector<2x8x1xf32>
    %11 = vector.broadcast %10 : vector<2x8x1xf32> to vector<2x8x8xf32>
    %12 = arith.mulf %7, %11 : vector<2x8x8xf32>
    %cst_7 = arith.constant dense<0.000000e+00> : vector<2x8xf32>
    %13 = vector.multi_reduction <add>, %12, %cst_7 [1] : vector<2x8x8xf32> to vector<2x8xf32>
    %cst_8 = arith.constant dense<0xFF800000> : vector<2x8xf32>
    %14 = vector.multi_reduction <maximumf>, %2, %cst_8 [1] : vector<2x8x8xf32> to vector<2x8xf32>
    %15 = vector.shape_cast %14 : vector<2x8xf32> to vector<2x1x8xf32>
    %16 = vector.broadcast %15 : vector<2x1x8xf32> to vector<2x8x8xf32>
    %17 = arith.subf %2, %16 : vector<2x8x8xf32>
    %18 = math.exp %17 : vector<2x8x8xf32>
    %cst_9 = arith.constant dense<0.000000e+00> : vector<2x8xf32>
    %19 = vector.multi_reduction <add>, %18, %cst_9 [1] : vector<2x8x8xf32> to vector<2x8xf32>
    %20 = vector.shape_cast %19 : vector<2x8xf32> to vector<2x1x8xf32>
    %21 = tpu.reciprocal %20 {approx = true} : vector<2x1x8xf32> -> vector<2x1x8xf32>
    %22 = vector.broadcast %21 : vector<2x1x8xf32> to vector<2x8x8xf32>
    %23 = arith.mulf %18, %22 : vector<2x8x8xf32>
    %cst_10 = arith.constant dense<0.000000e+00> : vector<2x8xf32>
    %24 = vector.multi_reduction <add>, %23, %cst_10 [2] : vector<2x8x8xf32> to vector<2x8xf32>
    %25 = vector.shape_cast %24 : vector<2x8xf32> to vector<2x8x1xf32>
    %26 = vector.broadcast %25 : vector<2x8x1xf32> to vector<2x8x32xf32>
    %27 = arith.mulf %26, %1 : vector<2x8x32xf32>
    %cst_11 = arith.constant dense<0.000000e+00> : vector<2x32xf32>
    %28 = vector.multi_reduction <add>, %27, %cst_11 [1] : vector<2x8x32xf32> to vector<2x32xf32>
    %29 = vector.shape_cast %13 : vector<2x8xf32> to vector<2x8x1xf32>
    %30 = vector.broadcast %29 : vector<2x8x1xf32> to vector<2x8x32xf32>
    %31 = arith.mulf %30, %0 : vector<2x8x32xf32>
    %cst_12 = arith.constant dense<0.000000e+00> : vector<2x32xf32>
    %32 = vector.multi_reduction <add>, %31, %cst_12 [1] : vector<2x8x32xf32> to vector<2x32xf32>
    %cst_13 = arith.constant dense<0.000000e+00> : vector<2x32xf32>
    %33 = vector.multi_reduction <add>, %0, %cst_13 [1] : vector<2x8x32xf32> to vector<2x32xf32>
    %cst_14 = arith.constant dense<0.000000e+00> : vector<2x32xf32>
    %34 = vector.multi_reduction <add>, %1, %cst_14 [1] : vector<2x8x32xf32> to vector<2x32xf32>
    %35 = tpu.concatenate %28, %33, %32, %34 in 1 : vector<2x32xf32>, vector<2x32xf32>, vector<2x32xf32>, vector<2x32xf32> -> vector<2x128xf32>
    %c0_15 = arith.constant 0 : index
    %c0_16 = arith.constant 0 : index
    %36 = vector.load %arg2[%c0_15, %c0_16] : memref<128x64xf32, #tpu.memory_space<vmem>>, vector<128x64xf32>
    %cst_17 = arith.constant dense<0.000000e+00> : vector<2x64xf32>
    %37 = tpu.matmul %35, %36, %cst_17 {dimension_numbers = #tpu.dot_dimension_numbers<[1], [0], [0], [1], [0, 0, 1, 1], [], []>} : vector<2x128xf32>, vector<128x64xf32>, vector<2x64xf32> -> vector<2x64xf32>
    %c0_18 = arith.constant 0 : index
    %c0_19 = arith.constant 0 : index
    %38 = vector.load %arg3[%c0_18, %c0_19] : memref<1x64xf32, #tpu.memory_space<vmem>>, vector<1x64xf32>
    %39 = vector.broadcast %38 : vector<1x64xf32> to vector<2x64xf32>
    %40 = arith.addf %37, %39 : vector<2x64xf32>
    %41 = math.tanh %40 : vector<2x64xf32>
    %c0_20 = arith.constant 0 : index
    %c0_21 = arith.constant 0 : index
    %42 = vector.load %arg4[%c0_20, %c0_21] : memref<64x16xf32, #tpu.memory_space<vmem>>, vector<64x16xf32>
    %cst_22 = arith.constant dense<0.000000e+00> : vector<2x16xf32>
    %43 = tpu.matmul %41, %42, %cst_22 {dimension_numbers = #tpu.dot_dimension_numbers<[1], [0], [0], [1], [0, 0, 1, 1], [], []>} : vector<2x64xf32>, vector<64x16xf32>, vector<2x16xf32> -> vector<2x16xf32>
    %c0_23 = arith.constant 0 : index
    %c0_24 = arith.constant 0 : index
    %44 = vector.load %arg5[%c0_23, %c0_24] : memref<1x16xf32, #tpu.memory_space<vmem>>, vector<1x16xf32>
    %45 = vector.broadcast %44 : vector<1x16xf32> to vector<2x16xf32>
    %46 = arith.addf %43, %45 : vector<2x16xf32>
    %47 = math.tanh %46 : vector<2x16xf32>
    %c0_25 = arith.constant 0 : index
    %c0_26 = arith.constant 0 : index
    %48 = vector.load %arg6[%c0_25, %c0_26] : memref<16x32xf32, #tpu.memory_space<vmem>>, vector<16x32xf32>
    %cst_27 = arith.constant dense<0.000000e+00> : vector<2x32xf32>
    %49 = tpu.matmul %47, %48, %cst_27 {dimension_numbers = #tpu.dot_dimension_numbers<[1], [0], [0], [1], [0, 0, 1, 1], [], []>} : vector<2x16xf32>, vector<16x32xf32>, vector<2x32xf32> -> vector<2x32xf32>
    %c0_28 = arith.constant 0 : index
    %c0_29 = arith.constant 0 : index
    %50 = vector.load %arg7[%c0_28, %c0_29] : memref<1x32xf32, #tpu.memory_space<vmem>>, vector<1x32xf32>
    %51 = vector.broadcast %50 : vector<1x32xf32> to vector<2x32xf32>
    %52 = arith.addf %49, %51 : vector<2x32xf32>
    %c0_30 = arith.constant 0 : index
    %c0_31 = arith.constant 0 : index
    %53 = vector.load %arg8[%c0_30, %c0_31] : memref<2x32xf32, #tpu.memory_space<vmem>>, vector<2x32xf32>
    tpu.vector_store %arg8[%c0_30, %c0_31], %52 {strides = array<i32>} : memref<2x32xf32, #tpu.memory_space<vmem>>, vector<2x32xf32>,
    return
  }
}

</mosaic_0001>

<llo_original>
// kernel: attention_approximate_posterior.1
$region0: #{attention_approximate_posterior.1}
  #allocation0 [shape = 'u32[]', space=smem, size = 0x4, offset = 0x4, fixed_abs, tag = 'smem constant byte address 0x4 - core index']
  #allocation1 [shape = 'u32[72,128]{1,0:T(1,128)}', space=vmem, size = 0x9000, scoped, tag = 'internal scratch']
  %s0 = inlined_call_operand.vmem [shape: f32[2,8,32], index: 0, kind: input, shape index: {}]
  %s1 = inlined_call_operand.vmem [shape: f32[2,8,32], index: 1, kind: input, shape index: {}]
  %s2 = inlined_call_operand.vmem [shape: f32[128,64], index: 2, kind: input, shape index: {}]
  %s3 = inlined_call_operand.vmem [shape: f32[1,64], index: 3, kind: input, shape index: {}]
  %s4 = inlined_call_operand.vmem [shape: f32[64,16], index: 4, kind: input, shape index: {}]
  %s5 = inlined_call_operand.vmem [shape: f32[1,16], index: 5, kind: input, shape index: {}]
  %s6 = inlined_call_operand.vmem [shape: f32[16,32], index: 6, kind: input, shape index: {}]
  %s7 = inlined_call_operand.vmem [shape: f32[1,32], index: 7, kind: input, shape index: {}]
  %s8 = inlined_call_operand.vmem [shape: f32[2,32], index: 8, kind: output, shape index: {}]
  %s9 = sld [smem:[#allocation0]]
  $region42: #{attention_approximate_posterior.1} parent=0
    _
  %s11 = ssub.s32 1, %s9
  %s12 = scalar_select 0, %s11, %s9
  // Predicated region
  $region2: #{attention_approximate_posterior.1} parent=0 // pred_check
    _
  $region3: #{attention_approximate_posterior.1} parent=0 // pred_check_branch
    %14 = sbr.rel (0) target = $region5
  $region4: #{attention_approximate_posterior.1} parent=0 // pred_region
    _
  $region5: #{attention_approximate_posterior.1} parent=0 // pred_fallthru
    _
  // Predicated region
  $region6: #{attention_approximate_posterior.1} parent=0 // pred_check
    _
  $region7: #{attention_approximate_posterior.1} parent=0 // pred_check_branch
    %16 = sbr.rel (0) target = $region9
  $region8: #{attention_approximate_posterior.1} parent=0 // pred_region
    _
  $region9: #{attention_approximate_posterior.1} parent=0 // pred_fallthru
    _
  // Predicated region
  $region10: #{attention_approximate_posterior.1} parent=0 // pred_check
    _
  $region11: #{attention_approximate_posterior.1} parent=0 // pred_check_branch
    %18 = sbr.rel (0) target = $region13
  $region12: #{attention_approximate_posterior.1} parent=0 // pred_region
    _
  $region13: #{attention_approximate_posterior.1} parent=0 // pred_fallthru
    _
  // Predicated region
  $region14: #{attention_approximate_posterior.1} parent=0 // pred_check
    _
  $region15: #{attention_approximate_posterior.1} parent=0 // pred_check_branch
    %20 = sbr.rel (0) target = $region17
  $region16: #{attention_approximate_posterior.1} parent=0 // pred_region
    _
  $region17: #{attention_approximate_posterior.1} parent=0 // pred_fallthru
    _
  // Predicated region
  $region18: #{attention_approximate_posterior.1} parent=0 // pred_check
    _
  $region19: #{attention_approximate_posterior.1} parent=0 // pred_check_branch
    %22 = sbr.rel (0) target = $region21
  $region20: #{attention_approximate_posterior.1} parent=0 // pred_region
    _
  $region21: #{attention_approximate_posterior.1} parent=0 // pred_fallthru
    _
  // Predicated region
  $region22: #{attention_approximate_posterior.1} parent=0 // pred_check
    _
  $region23: #{attention_approximate_posterior.1} parent=0 // pred_check_branch
    %24 = sbr.rel (0) target = $region25
  $region24: #{attention_approximate_posterior.1} parent=0 // pred_region
    _
  $region25: #{attention_approximate_posterior.1} parent=0 // pred_fallthru
    _
  // Predicated region
  $region26: #{attention_approximate_posterior.1} parent=0 // pred_check
    _
  $region27: #{attention_approximate_posterior.1} parent=0 // pred_check_branch
    %26 = sbr.rel (0) target = $region29
  $region28: #{attention_approximate_posterior.1} parent=0 // pred_region
    _
  $region29: #{attention_approximate_posterior.1} parent=0 // pred_fallthru
    _
  // Predicated region
  $region30: #{attention_approximate_posterior.1} parent=0 // pred_check
    _
  $region31: #{attention_approximate_posterior.1} parent=0 // pred_check_branch
    %28 = sbr.rel (0) target = $region33
  $region32: #{attention_approximate_posterior.1} parent=0 // pred_region
    _
  $region33: #{attention_approximate_posterior.1} parent=0 // pred_fallthru
    _
  %v29 = vld [vmem:[%s0] sm:$0xff]
  %v30 = vld [vmem:[%s0 + $0x8] sm:$0xff]
  %v31 = vld [vmem:[%s1] sm:$0xff]
  %v32 = vld [vmem:[%s1 + $0x8] sm:$0xff]
  %vm33 = vcmask 261120
  %v35 = vsel %vm33, %v31, 0
  %v38 = vsel %vm33, %v29, 0
  %40 = vmatpush.xpose.msra.mxu0 0.0
  %41 = vmatpush.xpose.msra.mxu0 0.0
  %42 = vmatpush.xpose.msra.mxu0 0.0
  %43 = vmatpush.xpose.msra.mxu0 0.0
  %44 = vmatpush.xpose.msra.mxu0 0.0
  %45 = vmatpush.xpose.msra.mxu0 0.0
  %46 = vmatpush.xpose.msra.mxu0 0.0
  %47 = vmatpush.xpose.msra.mxu0 0.0
  %48 = vmatpush.xpose.msra.mxu0 0.0
  %49 = vmatpush.xpose.msra.mxu0 0.0
  %50 = vmatpush.xpose.msra.mxu0 0.0
  %51 = vmatpush.xpose.msra.mxu0 0.0
  %52 = vmatpush.xpose.msra.mxu0 0.0
  %53 = vmatpush.xpose.msra.mxu0 0.0
  %54 = vmatpush.xpose.msra.mxu0 0.0
  %55 = vmatpush.xpose.msra.mxu0 %v38
  %56 = vmatmul.f32.gmra.mxu0 %v35
  %v57 = vpop.f32.mrf.mxu0
  %v58 = vadd.f32 0.0, %v57
  %59 = vdwg.mxu0
  %v61 = vsel %vm33, %v32, 0
  %v64 = vsel %vm33, %v30, 0
  %66 = vmatpush.xpose.msra.mxu0 0.0
  %67 = vmatpush.xpose.msra.mxu0 0.0
  %68 = vmatpush.xpose.msra.mxu0 0.0
  %69 = vmatpush.xpose.msra.mxu0 0.0
  %70 = vmatpush.xpose.msra.mxu0 0.0
  %71 = vmatpush.xpose.msra.mxu0 0.0
  %72 = vmatpush.xpose.msra.mxu0 0.0
  %73 = vmatpush.xpose.msra.mxu0 0.0
  %74 = vmatpush.xpose.msra.mxu0 0.0
  %75 = vmatpush.xpose.msra.mxu0 0.0
  %76 = vmatpush.xpose.msra.mxu0 0.0
  %77 = vmatpush.xpose.msra.mxu0 0.0
  %78 = vmatpush.xpose.msra.mxu0 0.0
  %79 = vmatpush.xpose.msra.mxu0 0.0
  %80 = vmatpush.xpose.msra.mxu0 0.0
  %81 = vmatpush.xpose.msra.mxu0 %v64
  %82 = vmatmul.f32.gmra.mxu0 %v61
  %v83 = vpop.f32.mrf.mxu0
  %v84 = vadd.f32 0.0, %v83
  %85 = vdwg.mxu0
  %vm86 = vcmask 64512
  %v87 = vsel %vm86, %v58, -inf
  %88 = vmax.xlane.f32.xlu0 %v87
  %v89 = vpop.xlane.xlu0 %88
  %v90 = vsel %vm86, %v84, -inf
  %91 = vmax.xlane.f32.xlu0 %v90
  %v92 = vpop.xlane.xlu0 %91
  %v93 = vsub.f32 %v58, %v89
  %v94 = vsub.f32 %v84, %v92
  %v95 = vmul.f32 %v93, 1.442695
  %v96 = vpow.pop %v95
  %v97 = vmul.f32 %v94, 1.442695
  %v98 = vpow.pop %v97
  %v99 = vsel %vm86, %v96, 0.0
  %100 = vadd.xlane.f32.xlu0 %v99
  %v101 = vpop.xlane.xlu0 %100
  %v102 = vsel %vm86, %v98, 0.0
  %103 = vadd.xlane.f32.xlu0 %v102
  %v104 = vpop.xlane.xlu0 %103
  %v105 = vrcp.pop %v101
  %v106 = vrcp.pop %v104
  %v107 = vmul.f32 %v96, %v105
  %v108 = vmul.f32 %v98, %v106
  %v109 = vsel %vm86, %v107, 0.0
  %v110 = vrot.slane %v109, 4
  %v111 = vadd.f32 %v109, %v110
  %v112 = vrot.slane %v111, 2
  %v113 = vadd.f32 %v111, %v112
  %v114 = vrot.slane %v113, 1
  %v115 = vadd.f32 %v113, %v114
  %v116 = vsel %vm86, %v108, 0.0
  %v117 = vrot.slane %v116, 4
  %v118 = vadd.f32 %v116, %v117
  %v119 = vrot.slane %v118, 2
  %v120 = vadd.f32 %v118, %v119
  %v121 = vrot.slane %v120, 1
  %v122 = vadd.f32 %v120, %v121
  %v123 = vrot.slane %v87, 4
  %v124 = vmax.f32 %v87, %v123
  %v125 = vrot.slane %v124, 2
  %v126 = vmax.f32 %v124, %v125
  %v127 = vrot.slane %v126, 1
  %v128 = vmax.f32 %v126, %v127
  %v129 = vrot.slane %v90, 4
  %v130 = vmax.f32 %v90, %v129
  %v131 = vrot.slane %v130, 2
  %v132 = vmax.f32 %v130, %v131
  %v133 = vrot.slane %v132, 1
  %v134 = vmax.f32 %v132, %v133
  %v135 = vsub.f32 %v58, %v128
  %v136 = vsub.f32 %v84, %v134
  %v137 = vmul.f32 %v135, 1.442695
  %v138 = vpow.pop %v137
  %v139 = vmul.f32 %v136, 1.442695
  %v140 = vpow.pop %v139
  %v141 = vsel %vm86, %v138, 0.0
  %v142 = vrot.slane %v141, 4
  %v143 = vadd.f32 %v141, %v142
  %v144 = vrot.slane %v143, 2
  %v145 = vadd.f32 %v143, %v144
  %v146 = vrot.slane %v145, 1
  %v147 = vadd.f32 %v145, %v146
  %v148 = vsel %vm86, %v140, 0.0
  %v149 = vrot.slane %v148, 4
  %v150 = vadd.f32 %v148, %v149
  %v151 = vrot.slane %v150, 2
  %v152 = vadd.f32 %v150, %v151
  %v153 = vrot.slane %v152, 1
  %v154 = vadd.f32 %v152, %v153
  %v155 = vrcp.pop %v147
  %v156 = vrcp.pop %v154
  %v157 = vmul.f32 %v138, %v155
  %v158 = vmul.f32 %v140, %v156
  %v159 = vsel %vm86, %v157, 0.0
  %160 = vadd.xlane.f32.xlu0 %v159
  %v161 = vpop.xlane.xlu0 %160
  %v162 = vsel %vm86, %v158, 0.0
  %163 = vadd.xlane.f32.xlu0 %v162
  %v164 = vpop.xlane.xlu0 %163
  %v165 = vmul.f32 %v161, %v31
  %v166 = vmul.f32 %v164, %v32
  %v167 = vsel %vm33, %v165, 0.0
  %v168 = vrot.slane %v167, 4
  %v169 = vadd.f32 %v167, %v168
  %v170 = vrot.slane %v169, 2
  %v171 = vadd.f32 %v169, %v170
  %v172 = vrot.slane %v171, 1
  %v173 = vadd.f32 %v171, %v172
  %v174 = vsel %vm33, %v166, 0.0
  %v175 = vrot.slane %v174, 4
  %v176 = vadd.f32 %v174, %v175
  %v177 = vrot.slane %v176, 2
  %v178 = vadd.f32 %v176, %v177
  %v179 = vrot.slane %v178, 1
  %v180 = vadd.f32 %v178, %v179
  %v181 = vlaneseq
  %v182 = vshrl.u32 %v181, 7
  %184 = vset.pattern.permute.xlu0 %v182
  %185 = vperm.xlu0 %184, %v115
  %v186 = vpop.permute.xlu0 %185
  %v187 = vlaneseq
  %v188 = vshrl.u32 %v187, 7
  %190 = vset.pattern.permute.xlu0 %v188
  %191 = vperm.xlu0 %190, %v122
  %v192 = vpop.permute.xlu0 %191
  %v193 = vmul.f32 %v186, %v29
  %v194 = vmul.f32 %v192, %v30
  %v195 = vsel %vm33, %v193, 0.0
  %v196 = vrot.slane %v195, 4
  %v197 = vadd.f32 %v195, %v196
  %v198 = vrot.slane %v197, 2
  %v199 = vadd.f32 %v197, %v198
  %v200 = vrot.slane %v199, 1
  %v201 = vadd.f32 %v199, %v200
  %v202 = vsel %vm33, %v194, 0.0
  %v203 = vrot.slane %v202, 4
  %v204 = vadd.f32 %v202, %v203
  %v205 = vrot.slane %v204, 2
  %v206 = vadd.f32 %v204, %v205
  %v207 = vrot.slane %v206, 1
  %v208 = vadd.f32 %v206, %v207
  %v209 = vsel %vm33, %v29, 0.0
  %v210 = vrot.slane %v209, 4
  %v211 = vadd.f32 %v209, %v210
  %v212 = vrot.slane %v211, 2
  %v213 = vadd.f32 %v211, %v212
  %v214 = vrot.slane %v213, 1
  %v215 = vadd.f32 %v213, %v214
  %v216 = vsel %vm33, %v30, 0.0
  %v217 = vrot.slane %v216, 4
  %v218 = vadd.f32 %v216, %v217
  %v219 = vrot.slane %v218, 2
  %v220 = vadd.f32 %v218, %v219
  %v221 = vrot.slane %v220, 1
  %v222 = vadd.f32 %v220, %v221
  %v223 = vsel %vm33, %v31, 0.0
  %v224 = vrot.slane %v223, 4
  %v225 = vadd.f32 %v223, %v224
  %v226 = vrot.slane %v225, 2
  %v227 = vadd.f32 %v225, %v226
  %v228 = vrot.slane %v227, 1
  %v229 = vadd.f32 %v227, %v228
  %v230 = vsel %vm33, %v32, 0.0
  %v231 = vrot.slane %v230, 4
  %v232 = vadd.f32 %v230, %v231
  %v233 = vrot.slane %v232, 2
  %v234 = vadd.f32 %v232, %v233
  %v235 = vrot.slane %v234, 1
  %v236 = vadd.f32 %v234, %v235
  %vm239 = vcmask 1041409
  %v240 = vsel %vm239, %v180, %v173
  %v244 = vsel %vm239, %v222, %v215
  %245 = vrot.lane.b32.xlu0 %v244, 32
  %v246 = vpop.permute.xlu0 %245
  %v250 = vsel %vm239, %v208, %v201
  %251 = vrot.lane.b32.xlu0 %v250, 64
  %v252 = vpop.permute.xlu0 %251
  %v256 = vsel %vm239, %v236, %v229
  %257 = vrot.lane.b32.xlu0 %v256, 96
  %v258 = vpop.permute.xlu0 %257
  %v260 = vsel %vm33, %v240, %v246
  %vm261 = vcmask 523264
  %v262 = vsel %vm261, %v260, %v252
  %vm263 = vcmask 785408
  %v264 = vsel %vm263, %v262, %v258
  %v265 = vld [vmem:[%s2] sm:$0xff]
  %v266 = vld [vmem:[%s2 + $0x8] sm:$0xff]
  %v267 = vld [vmem:[%s2 + $0x10] sm:$0xff]
  %v268 = vld [vmem:[%s2 + $0x18] sm:$0xff]
  %v269 = vld [vmem:[%s2 + $0x20] sm:$0xff]
  %v270 = vld [vmem:[%s2 + $0x28] sm:$0xff]
  %v271 = vld [vmem:[%s2 + $0x30] sm:$0xff]
  %v272 = vld [vmem:[%s2 + $0x38] sm:$0xff]
  %v273 = vld [vmem:[%s2 + $0x40] sm:$0xff]
  %v274 = vld [vmem:[%s2 + $0x48] sm:$0xff]
  %v275 = vld [vmem:[%s2 + $0x50] sm:$0xff]
  %v276 = vld [vmem:[%s2 + $0x58] sm:$0xff]
  %v277 = vld [vmem:[%s2 + $0x60] sm:$0xff]
  %v278 = vld [vmem:[%s2 + $0x68] sm:$0xff]
  %v279 = vld [vmem:[%s2 + $0x70] sm:$0xff]
  %v280 = vld [vmem:[%s2 + $0x78] sm:$0xff]
  %v281 = vld [vmem:[%s3] sm:$0x1]
  %v283 = vperm.slane %v281, 0
  %285 = vmatpush.msra.mxu0 %v280
  %286 = vmatpush.msra.mxu0 %v279
  %287 = vmatpush.msra.mxu0 %v278
  %288 = vmatpush.msra.mxu0 %v277
  %289 = vmatpush.msra.mxu0 %v276
  %290 = vmatpush.msra.mxu0 %v275
  %291 = vmatpush.msra.mxu0 %v274
  %292 = vmatpush.msra.mxu0 %v273
  %293 = vmatpush.msra.mxu0 %v272
  %294 = vmatpush.msra.mxu0 %v271
  %295 = vmatpush.msra.mxu0 %v270
  %296 = vmatpush.msra.mxu0 %v269
  %297 = vmatpush.msra.mxu0 %v268
  %298 = vmatpush.msra.mxu0 %v267
  %299 = vmatpush.msra.mxu0 %v266
  %300 = vmatpush.msra.mxu0 %v265
  %301 = vmatmul.f32.gmra.mxu0 %v264
  %v302 = vpop.f32.mrf.mxu0
  %v303 = vadd.f32 %v283, %v302
  %304 = vdwg.mxu0
  %v305 = vtanh.pop %v303
  %v306 = vld [vmem:[%s4] sm:$0xff]
  %v307 = vld [vmem:[%s4 + $0x8] sm:$0xff]
  %v308 = vld [vmem:[%s4 + $0x10] sm:$0xff]
  %v309 = vld [vmem:[%s4 + $0x18] sm:$0xff]
  %v310 = vld [vmem:[%s4 + $0x20] sm:$0xff]
  %v311 = vld [vmem:[%s4 + $0x28] sm:$0xff]
  %v312 = vld [vmem:[%s4 + $0x30] sm:$0xff]
  %v313 = vld [vmem:[%s4 + $0x38] sm:$0xff]
  %v314 = vld [vmem:[%s5] sm:$0x1]
  %v316 = vperm.slane %v314, 0
  %v319 = vsel %vm261, %v305, 0
  %321 = vmatpush.msra.mxu0 0.0
  %322 = vmatpush.msra.mxu0 0.0
  %323 = vmatpush.msra.mxu0 0.0
  %324 = vmatpush.msra.mxu0 0.0
  %325 = vmatpush.msra.mxu0 0.0
  %326 = vmatpush.msra.mxu0 0.0
  %327 = vmatpush.msra.mxu0 0.0
  %328 = vmatpush.msra.mxu0 0.0
  %329 = vmatpush.msra.mxu0 %v313
  %330 = vmatpush.msra.mxu0 %v312
  %331 = vmatpush.msra.mxu0 %v311
  %332 = vmatpush.msra.mxu0 %v310
  %333 = vmatpush.msra.mxu0 %v309
  %334 = vmatpush.msra.mxu0 %v308
  %335 = vmatpush.msra.mxu0 %v307
  %336 = vmatpush.msra.mxu0 %v306
  %337 = vmatmul.f32.gmra.mxu0 %v319
  %v338 = vpop.f32.mrf.mxu0
  %v339 = vadd.f32 %v316, %v338
  %340 = vdwg.mxu0
  %v341 = vtanh.pop %v339
  %v342 = vld [vmem:[%s6] sm:$0xff]
  %v343 = vld [vmem:[%s6 + $0x8] sm:$0xff]
  %v344 = vld [vmem:[%s7] sm:$0x1]
  %v346 = vperm.slane %v344, 0
  %vm348 = vcmask 130048
  %v350 = vsel %vm348, %v341, 0
  %352 = vmatpush.msra.mxu0 0.0
  %353 = vmatpush.msra.mxu0 0.0
  %354 = vmatpush.msra.mxu0 0.0
  %355 = vmatpush.msra.mxu0 0.0
  %356 = vmatpush.msra.mxu0 0.0
  %357 = vmatpush.msra.mxu0 0.0
  %358 = vmatpush.msra.mxu0 0.0
  %359 = vmatpush.msra.mxu0 0.0
  %360 = vmatpush.msra.mxu0 0.0
  %361 = vmatpush.msra.mxu0 0.0
  %362 = vmatpush.msra.mxu0 0.0
  %363 = vmatpush.msra.mxu0 0.0
  %364 = vmatpush.msra.mxu0 0.0
  %365 = vmatpush.msra.mxu0 0.0
  %366 = vmatpush.msra.mxu0 %v343
  %367 = vmatpush.msra.mxu0 %v342
  %368 = vmatmul.f32.gmra.mxu0 %v350
  %v369 = vpop.f32.mrf.mxu0
  %v370 = vadd.f32 %v346, %v369
  %371 = vdwg.mxu0
  %vm372 = vcmask 254976
  %373 = vst.msk [vmem:[%s8] sm:$0x3] %vm372, %v370
  // Predicated region
  $region34: #{attention_approximate_posterior.1} parent=0 // pred_check
    _
  $region35: #{attention_approximate_posterior.1} parent=0 // pred_check_branch
    %375 = sbr.rel (0) target = $region37
  $region36: #{attention_approximate_posterior.1} parent=0 // pred_region
    _
  $region37: #{attention_approximate_posterior.1} parent=0 // pred_fallthru
    _
  // Predicated region
  $region38: #{attention_approximate_posterior.1} parent=0 // pred_check
    _
  $region39: #{attention_approximate_posterior.1} parent=0 // pred_check_branch
    %377 = sbr.rel (0) target = $region41
  $region40: #{attention_approximate_posterior.1} parent=0 // pred_region
    _
  $region41: #{attention_approximate_posterior.1} parent=0 // pred_fallthru
    _

</llo_original>
